<compile_context>
chip_gen: v7x
topology: tpu7x:2x2x1
jax: 0.10.0
libtpu: 0.0.40
codegen_flags: <defaults>
</compile_context>

<pallas_src>
import functools

import jax
import jax.numpy as jnp
from jax import lax
from jax.experimental import pallas as pl
from jax.experimental.pallas import tpu as pltpu

F32 = jnp.float32
BF16 = jnp.bfloat16
_dot = functools.partial(jnp.dot, preferred_element_type=jnp.float32)
_VMEM_LIMIT = 64 * 1024 * 1024


def _round_up(n, m):
    return ((n + m - 1) // m) * m


def _largest_divisor_leq(n, cap):
    for c in range(min(n, cap), 0, -1):
        if n % c == 0:
            return c
    return 1


# --------------------------------------------------------------------------- #
# Kernels
# --------------------------------------------------------------------------- #
def _gemm_bias_kernel(x_ref, w_ref, b_ref, o_ref, *, activation=None):
    """One-shot GEMM: o = act(x @ w + b). Used for all hoisted projections."""
    y = _dot(x_ref[...], w_ref[...]) + b_ref[...]
    if activation == "tanh":
        y = jnp.tanh(y)
    o_ref[...] = y


def _vocab_proj_kernel(x_ref, w_ref, o_ref):
    """Lane-dense logits tile: bf16 operands, f32 accumulation."""
    o_ref[...] = jnp.dot(x_ref[...], w_ref[...],
                         preferred_element_type=jnp.float32)


def _encoder_kernel(gix_ref, whh_ref, bhh_ref, out_ref):
    """One GRU direction per grid step (grid=(2,), 'parallel' -> v7x 2-TC split).

    gix_ref: (Tx, B, 3H) precomputed x@W_ih + b_ih for this direction.
    out_ref: (Tx, B, H)  hidden state per timestep (time-major).
    """
    Tx, B, H3 = gix_ref.shape
    H = H3 // 3
    d = pl.program_id(0)                    # 0 = forward scan, 1 = reversed scan
    Whh = whh_ref[...]                      # (H, 3H) pre-transposed on host
    Bh = bhh_ref[...]                       # (1, 3H)

    def step(i, h):
        t = jnp.where(d == 0, i, Tx - 1 - i)
        gi = gix_ref[t]                     # hoisted input gates (B, 3H)
        gh = _dot(h, Whh) + Bh              # only recurrent GEMM on the path
        r = jax.nn.sigmoid(gi[:, :H] + gh[:, :H])
        z = jax.nn.sigmoid(gi[:, H:2 * H] + gh[:, H:2 * H])
        n = jnp.tanh(gi[:, 2 * H:] + r * gh[:, 2 * H:])
        h = (1.0 - z) * n + z * h
        out_ref[t] = h
        return h

    lax.fori_loop(0, Tx, step, jnp.zeros((B, H), F32), unroll=2)


def _decoder_kernel(gp_ref, enc_ref, pkeys_ref, mask_ref, h0_ref,
                    wq_ref, ve_ref, wic_ref, whh_ref, bh_ref, wph_ref, wpc_ref,
                    pre_ref, h_scratch):
    """Attention-GRU decoder over one Ty chunk; h carried in VMEM scratch."""
    Tc, B, _ = gp_ref.shape
    H = pre_ref.shape[-1]

    @pl.when(pl.program_id(0) == 0)
    def _():
        h_scratch[...] = h0_ref[...]        # decoder.initialize() result

    enc = enc_ref[...]                      # (B, Tx, 2H)
    pkeys = pkeys_ref[...]                  # (B, Tx, H) precomputed key_layer(enc)
    neg = (1.0 - mask_ref[...]) * (-1e30)   # additive attention mask (B, Tx)
    Wq, Wic, Whh, Bh = wq_ref[...], wic_ref[...], whh_ref[...], bh_ref[...]
    Wph, Wpc = wph_ref[...], wpc_ref[...]
    # hoist the broadcast out of the time loop (JAX does not CSE broadcasts)
    ve_b = jnp.broadcast_to(ve_ref[...].reshape(1, 1, H), (B, 1, H))

    def step(i, h):
        gp = gp_ref[i]                      # (B, 4H) hoisted y-GEMMs
        gi_y = gp[:, :3 * H]                # embed@W_ie + b_ih
        pre_y = gp[:, 3 * H:]               # embed@W_pe + b_pre

        # --- Bahdanau attention; both reductions on the MXU ------------------
        q = _dot(h, Wq)                                           # (B, H)
        e = jnp.tanh(q[:, None, :] + pkeys)                       # (B, Tx, H)
        scores = jnp.einsum('bqh,bth->bqt', ve_b, e,
                            preferred_element_type=jnp.float32)[:, 0, :] + neg
        m = jnp.max(scores, axis=-1, keepdims=True)
        p = jnp.exp(scores - m)
        alphas = p * pl.reciprocal(jnp.sum(p, axis=-1, keepdims=True),
                                   approx=True)
        context = jnp.einsum('bqt,bth->bqh', alphas[:, None, :], enc,
                             preferred_element_type=jnp.float32)[:, 0, :]

        # --- fused-gate GRU step on [embed_y ; context] ----------------------
        gi = gi_y + _dot(context, Wic)
        gh = _dot(h, Whh) + Bh
        r = jax.nn.sigmoid(gi[:, :H] + gh[:, :H])
        z = jax.nn.sigmoid(gi[:, H:2 * H] + gh[:, H:2 * H])
        n = jnp.tanh(gi[:, 2 * H:] + r * gh[:, 2 * H:])
        h = (1.0 - z) * n + z * h

        # --- pre_output = Linear([embed_y ; h ; context]) ---------------------
        pre_ref[i] = pre_y + _dot(h, Wph) + _dot(context, Wpc)
        return h

    h_final = lax.fori_loop(0, Tc, step, h_scratch[...])
    h_scratch[...] = h_final                # carry across Ty chunks


# --------------------------------------------------------------------------- #
# Wrappers
# --------------------------------------------------------------------------- #
def one_shot_gemm(x2d, w, b=None, activation=None):
    """Single-invocation GEMM for hoisted, non-recurrent projections."""
    M, K = x2d.shape
    N = w.shape[1]
    if b is None:
        b = jnp.zeros((1, N), F32)
    return pl.pallas_call(
        functools.partial(_gemm_bias_kernel, activation=activation),
        out_shape=jax.ShapeDtypeStruct((M, N), F32),
    )(x2d.astype(F32), w.astype(F32), b.astype(F32))


def stacked_dir_gemm(x2d, w_s, b_s):
    """o[d] = x @ w[d] + b[d] for both encoder directions (grid over d)."""
    D, K, N = w_s.shape
    M = x2d.shape[0]
    return pl.pallas_call(
        functools.partial(_gemm_bias_kernel, activation=None),
        out_shape=jax.ShapeDtypeStruct((D, M, N), F32),
        grid=(D,),
        in_specs=[pl.BlockSpec((M, K), lambda d: (0, 0)),
                  pl.BlockSpec((None, K, N), lambda d: (d, 0, 0)),
                  pl.BlockSpec((None, 1, N), lambda d: (d, 0, 0))],
        out_specs=pl.BlockSpec((None, M, N), lambda d: (d, 0, 0)),
        compiler_params=pltpu.CompilerParams(
            dimension_semantics=("parallel",)),
    )(x2d.astype(F32), w_s.astype(F32), b_s.astype(F32))


def run_encoder(x_tm_embed, enc_params, H):
    """Bidirectional GRU encoder; directions split over a parallel grid axis."""
    Tx, Bp, E = x_tm_embed.shape
    wf_ih, wf_hh, bf_ih, bf_hh = enc_params["fwd"]
    wb_ih, wb_hh, bb_ih, bb_hh = enc_params["bwd"]

    # Host-side pre-transpose + direction stacking (no in-kernel .T).
    w_ih_s = jnp.stack([wf_ih.T, wb_ih.T])                       # (2, E, 3H)
    b_ih_s = jnp.stack([bf_ih.reshape(1, 3 * H), bb_ih.reshape(1, 3 * H)])
    w_hh_s = jnp.stack([wf_hh.T, wb_hh.T]).astype(F32)           # (2, H, 3H)
    b_hh_s = jnp.stack([bf_hh.reshape(1, 3 * H),
                        bb_hh.reshape(1, 3 * H)]).astype(F32)

    # Hoisted input-to-hidden GEMM for ALL timesteps, both directions (review #1).
    x2d = x_tm_embed.reshape(Tx * Bp, E)
    gix = stacked_dir_gemm(x2d, w_ih_s, b_ih_s).reshape(2, Tx, Bp, 3 * H)

    out = pl.pallas_call(
        _encoder_kernel,
        out_shape=jax.ShapeDtypeStruct((2, Tx, Bp, H), F32),
        grid=(2,),
        in_specs=[pl.BlockSpec((None, Tx, Bp, 3 * H), lambda d: (d, 0, 0, 0)),
                  pl.BlockSpec((None, H, 3 * H), lambda d: (d, 0, 0)),
                  pl.BlockSpec((None, 1, 3 * H), lambda d: (d, 0, 0))],
        out_specs=pl.BlockSpec((None, Tx, Bp, H), lambda d: (d, 0, 0, 0)),
        compiler_params=pltpu.CompilerParams(
            dimension_semantics=("parallel",),
            vmem_limit_bytes=_VMEM_LIMIT),
    )(gix, w_hh_s, b_hh_s)

    # Batch-major encoder outputs for attention (one small concat + transpose).
    enc_tm = jnp.concatenate([out[0], out[1]], axis=-1)          # (Tx, Bp, 2H)
    enc_output = jnp.transpose(enc_tm, (1, 0, 2))                # (Bp, Tx, 2H)
    enc_final = jnp.concatenate([out[0, Tx - 1], out[1, 0]], axis=-1)  # (Bp, 2H)
    return enc_output, enc_final


def run_decoder(y_tm_embed, enc_output, x_mask, enc_final, dec, H, ty_chunk=4):
    """Attention-GRU decoder: Ty-chunked sequential grid, h in VMEM scratch."""
    Ty, Bp, E = y_tm_embed.shape
    Tx = enc_output.shape[1]

    # One-shot GEMMs hoisted out of the recurrence:
    #   decoder.initialize(): h0 = tanh(init_layer(enc_final))
    #   attention key_layer:  proj_keys = enc_output @ W_key^T
    h0 = one_shot_gemm(enc_final, dec["w_init"].T, dec["b_init"].reshape(1, H),
                       activation="tanh")                                 # (Bp,H)
    pkeys = one_shot_gemm(enc_output.reshape(Bp * Tx, 2 * H),
                          dec["w_key"].T).reshape(Bp, Tx, H)              # (Bp,Tx,H)

    # Hoisted target-embedding GEMMs: [embed@W_ie + b_ih | embed@W_pe + b_pre].
    w_ih_t = dec["w_ih"].T.astype(F32)                  # (E+2H, 3H)
    w_pre_t = dec["w_pre"].T.astype(F32)                # (E+3H, H)
    w_y = jnp.concatenate([w_ih_t[:E], w_pre_t[:E]], axis=1)      # (E, 4H)
    b_y = jnp.concatenate([dec["b_ih"].reshape(1, 3 * H),
                           dec["b_pre"].reshape(1, H)], axis=1)   # (1, 4H)
    gp = one_shot_gemm(y_tm_embed.reshape(Ty * Bp, E), w_y,
                       b_y).reshape(Ty, Bp, 4 * H)

    Tc = _largest_divisor_leq(Ty, ty_chunk)             # time-chunked pipeline
    n_chunks = Ty // Tc

    args = (gp, enc_output.astype(F32), pkeys, x_mask.astype(F32), h0,
            dec["w_query"].T.astype(F32),
            dec["v_energy"].reshape(1, H).astype(F32),
            w_ih_t[E:],                                  # W_ic (2H, 3H)
            dec["w_hh"].T.astype(F32),                   # W_hh (H, 3H)
            dec["b_hh"].reshape(1, 3 * H).astype(F32),
            w_pre_t[E:E + H],                            # W_ph (H, H)
            w_pre_t[E + H:])                             # W_pc (2H, H)

    pre_tm = pl.pallas_call(
        _decoder_kernel,
        out_shape=jax.ShapeDtypeStruct((Ty, Bp, H), F32),
        grid=(n_chunks,),
        in_specs=[
            pl.BlockSpec((Tc, Bp, 4 * H), lambda c: (c, 0, 0)),     # gp chunk
            pl.BlockSpec((Bp, Tx, 2 * H), lambda c: (0, 0, 0)),     # enc (resident)
            pl.BlockSpec((Bp, Tx, H), lambda c: (0, 0, 0)),         # proj_keys
            pl.BlockSpec((Bp, Tx), lambda c: (0, 0)),               # mask
            pl.BlockSpec((Bp, H), lambda c: (0, 0)),                # h0
            pl.BlockSpec((H, H), lambda c: (0, 0)),                 # W_q
            pl.BlockSpec((1, H), lambda c: (0, 0)),                 # v_energy
            pl.BlockSpec((2 * H, 3 * H), lambda c: (0, 0)),         # W_ic
            pl.BlockSpec((H, 3 * H), lambda c: (0, 0)),             # W_hh
            pl.BlockSpec((1, 3 * H), lambda c: (0, 0)),             # b_hh
            pl.BlockSpec((H, H), lambda c: (0, 0)),                 # W_ph
            pl.BlockSpec((2 * H, H), lambda c: (0, 0)),             # W_pc
        ],
        out_specs=pl.BlockSpec((Tc, Bp, H), lambda c: (c, 0, 0)),
        scratch_shapes=[pltpu.VMEM((Bp, H), F32)],                  # carried h
        compiler_params=pltpu.CompilerParams(
            dimension_semantics=("arbitrary",),
            vmem_limit_bytes=_VMEM_LIMIT),
    )(*args)
    return pre_tm                                        # (Ty, Bp, H) time-major


def run_output_projection(pre_2d, output_matrix, tn_max=512, tm_max=256):
    """generate_tm: logits = pre_output @ W_out^T, tiled over M and V."""
    M, H = pre_2d.shape
    Vt = output_matrix.shape[0]
    tn = min(tn_max, _round_up(Vt, 128))
    Vp = _round_up(Vt, tn)
    tm = min(tm_max, _round_up(M, 8))
    Mp = _round_up(M, tm)

    # bf16 MXU operands / f32 accumulation: halves HBM traffic of the
    # weight-streaming vocab GEMM (review #6).
    x = jnp.zeros((Mp, H), BF16).at[:M].set(pre_2d.astype(BF16))
    w = jnp.zeros((H, Vp), BF16).at[:, :Vt].set(output_matrix.T.astype(BF16))

    logits = pl.pallas_call(
        _vocab_proj_kernel,
        out_shape=jax.ShapeDtypeStruct((Mp, Vp), F32),
        grid=(Mp // tm, Vp // tn),
        in_specs=[pl.BlockSpec((tm, H), lambda i, j: (i, 0)),
                  pl.BlockSpec((H, tn), lambda i, j: (0, j))],
        out_specs=pl.BlockSpec((tm, tn), lambda i, j: (i, j)),
        compiler_params=pltpu.CompilerParams(
            dimension_semantics=("parallel", "parallel"),
            vmem_limit_bytes=_VMEM_LIMIT),
    )(x, w)
    return logits[:M, :Vt]


def cond_nmt_forward(params, x, x_mask, x_len, y):
    """Equivalent of CondNMT.forward(x, x_mask, x_len, y) in eval mode."""
    del x_len  # TODO(synk): pack_padded_sequence not implemented; mask gates attention.
    H = params["H"]
    B, Tx = x.shape
    Ty = y.shape[1]
    Vt = params["output_matrix"].shape[0]

    # Pad batch to a multiple of 8 sublanes (review #5); sliced off at the end.
    Bp = _round_up(B, 8)
    xp = jnp.zeros((Bp, Tx), jnp.int32).at[:B].set(x)
    yp = jnp.zeros((Bp, Ty), jnp.int32).at[:B].set(y)
    maskp = jnp.zeros((Bp, Tx), F32).at[:B].set(x_mask.astype(F32))

    # Time-major embedding gathers (transpose folded into the gather, review #9).
    x_tm = jnp.take(params["emb_src"], xp.T, axis=0).astype(F32)   # (Tx, Bp, E)
    y_tm = jnp.take(params["emb_tgt"], yp.T, axis=0).astype(F32)   # (Ty, Bp, E)

    enc_output, enc_final = run_encoder(x_tm, params["enc"], H)
    pre_tm = run_decoder(y_tm, enc_output, maskp, enc_final, params["dec"], H)

    # Small (Ty,Bp,H) -> (Bp,Ty,H) transpose so the (big) logits come out in the
    # final (B, Ty, V) layout with no transpose of the logits themselves.
    pre_b = jnp.transpose(pre_tm, (1, 0, 2)).reshape(Bp * Ty, H)
    logits = run_output_projection(pre_b, params["output_matrix"])
    return logits.reshape(Bp, Ty, Vt)[:B]                            # (B, Ty, Vt)


# --------------------------------------------------------------------------- #
# Deterministic parameter init (shapes as in CondNMT.__init__ + its submodules)
# --------------------------------------------------------------------------- #
def init_params(key, Vs, Vt, E, H):
    ks = jax.random.split(key, 22)

    def rnd(k, shape, scale=0.1):
        return (scale * jax.random.normal(k, shape)).astype(F32)

    emb_src = rnd(ks[0], (Vs, E)).at[0].set(0.0)             # padding_idx = 0
    emb_tgt = rnd(ks[1], (Vt, E)).at[0].set(0.0)
    output_matrix = rnd(ks[2], (Vt, H))                      # tied_embeddings = False

    enc = {
        "fwd": (rnd(ks[3], (3 * H, E)), rnd(ks[4], (3 * H, H)),
                rnd(ks[5], (3 * H,)), rnd(ks[6], (3 * H,))),
        "bwd": (rnd(ks[7], (3 * H, E)), rnd(ks[8], (3 * H, H)),
                rnd(ks[9], (3 * H,)), rnd(ks[10], (3 * H,))),
    }
    dec = {
        "w_init": rnd(ks[11], (H, 2 * H)), "b_init": rnd(ks[12], (H,)),
        "w_key": rnd(ks[13], (H, 2 * H)),
        "w_query": rnd(ks[14], (H, H)),
        "v_energy": rnd(ks[15], (1, H)),
        "w_ih": rnd(ks[16], (3 * H, E + 2 * H)),
        "w_hh": rnd(ks[17], (3 * H, H)),
        "b_ih": rnd(ks[18], (3 * H,)),
        "b_hh": rnd(ks[19], (3 * H,)),
        "w_pre": rnd(ks[20], (H, E + H + 2 * H)),
        "b_pre": rnd(ks[21], (H,)),
    }
    return {"emb_src": emb_src, "emb_tgt": emb_tgt, "output_matrix": output_matrix,
            "enc": enc, "dec": dec, "H": H}


# --------------------------------------------------------------------------- #
if __name__ == "__main__":
    Vs, Vt, E, H = 40, 48, 32, 32
    B, Tx, Ty = 2, 8, 8

    key = jax.random.PRNGKey(0)
    pkey, xkey, ykey = jax.random.split(key, 3)
    params = init_params(pkey, Vs, Vt, E, H)

    x = jax.random.randint(xkey, (B, Tx), 1, Vs, dtype=jnp.int32)
    y = jax.random.randint(ykey, (B, Ty), 1, Vt, dtype=jnp.int32)
    x_len = jnp.full((B,), Tx, dtype=jnp.int32)
    x_mask = jnp.ones((B, Tx), dtype=F32)

    logits = cond_nmt_forward(params, x, x_mask, x_len, y)
    logits = jax.block_until_ready(logits)

    assert logits.shape == (B, Ty, Vt), logits.shape
    assert bool(jnp.all(jnp.isfinite(logits)))
    print("KERNEL_OK")
</pallas_src>

<mosaic_0001>
module attributes {stable_mosaic.version = 11 : i64} {
  func.func @_gemm_bias_kernel(%arg0: i32, %arg1: memref<64x32xf32, #tpu.memory_space<vmem>>, %arg2: memref<1x32x96xf32, #tpu.memory_space<vmem>>, %arg3: memref<1x1x96xf32, #tpu.memory_space<vmem>>, %arg4: memref<1x64x96xf32, #tpu.memory_space<vmem>>) attributes {dimension_semantics = [#tpu.dimension_semantics<parallel>], iteration_bounds = array<i64: 2>, scalar_prefetch = 0 : i64, scratch_operands = 0 : i64, tpu.core_type = #tpu.core_type<tc>, window_params = [{pipeline_mode = #tpu.pipeline_mode<synchronous>, transform_indices = @transform_0, window_bounds = array<i64: 64, 32>}, {transform_indices = @transform_1, window_bounds = array<i64: 1, 32, 96>}, {transform_indices = @transform_2, window_bounds = array<i64: 1, 1, 96>}, {transform_indices = @transform_3, window_bounds = array<i64: 1, 64, 96>}]} {
    %c0 = arith.constant 0 : index
    %c0_0 = arith.constant 0 : index
    %0 = vector.load %arg1[%c0, %c0_0] : memref<64x32xf32, #tpu.memory_space<vmem>>, vector<64x32xf32>
    %c0_1 = arith.constant 0 : index
    %c0_2 = arith.constant 0 : index
    %c0_3 = arith.constant 0 : index
    %1 = vector.load %arg2[%c0_1, %c0_2, %c0_3] : memref<1x32x96xf32, #tpu.memory_space<vmem>>, vector<1x32x96xf32>
    %2 = vector.shape_cast %1 : vector<1x32x96xf32> to vector<32x96xf32>
    %cst = arith.constant dense<0.000000e+00> : vector<64x96xf32>
    %3 = tpu.matmul %0, %2, %cst {dimension_numbers = #tpu.dot_dimension_numbers<[1], [0], [0], [1], [0, 0, 1, 1], [], []>} : vector<64x32xf32>, vector<32x96xf32>, vector<64x96xf32> -> vector<64x96xf32>
    %c0_4 = arith.constant 0 : index
    %c0_5 = arith.constant 0 : index
    %c0_6 = arith.constant 0 : index
    %4 = vector.load %arg3[%c0_4, %c0_5, %c0_6] : memref<1x1x96xf32, #tpu.memory_space<vmem>>, vector<1x1x96xf32>
    %5 = vector.shape_cast %4 : vector<1x1x96xf32> to vector<1x96xf32>
    %6 = vector.broadcast %5 : vector<1x96xf32> to vector<64x96xf32>
    %7 = arith.addf %3, %6 : vector<64x96xf32>
    %c0_7 = arith.constant 0 : index
    %c0_8 = arith.constant 0 : index
    %c0_9 = arith.constant 0 : index
    %8 = vector.load %arg4[%c0_7, %c0_8, %c0_9] : memref<1x64x96xf32, #tpu.memory_space<vmem>>, vector<1x64x96xf32>
    %9 = vector.shape_cast %8 : vector<1x64x96xf32> to vector<64x96xf32>
    %10 = vector.shape_cast %7 : vector<64x96xf32> to vector<1x64x96xf32>
    tpu.vector_store %arg4[%c0_7, %c0_8, %c0_9], %10 {strides = array<i32>} : memref<1x64x96xf32, #tpu.memory_space<vmem>>, vector<1x64x96xf32>,
    return
  }
  func.func @transform_0(%arg0: i32) -> (i32, i32) {
    %c0_i32 = arith.constant 0 : i32
    %c0_i32_0 = arith.constant 0 : i32
    %c0_i32_1 = arith.constant 0 : i32
    return %c0_i32, %c0_i32_0 : i32, i32
  }
  func.func @transform_1(%arg0: i32) -> (i32, i32, i32) {
    %c0_i32 = arith.constant 0 : i32
    %c0_i32_0 = arith.constant 0 : i32
    %c0_i32_1 = arith.constant 0 : i32
    return %arg0, %c0_i32, %c0_i32_0 : i32, i32, i32
  }
  func.func @transform_2(%arg0: i32) -> (i32, i32, i32) {
    %c0_i32 = arith.constant 0 : i32
    %c0_i32_0 = arith.constant 0 : i32
    %c0_i32_1 = arith.constant 0 : i32
    return %arg0, %c0_i32, %c0_i32_0 : i32, i32, i32
  }
  func.func @transform_3(%arg0: i32) -> (i32, i32, i32) {
    %c0_i32 = arith.constant 0 : i32
    %c0_i32_0 = arith.constant 0 : i32
    %c0_i32_1 = arith.constant 0 : i32
    return %arg0, %c0_i32, %c0_i32_0 : i32, i32, i32
  }
}

</mosaic_0001>

<llo_original>
// kernel: tpu_custom_call.1
$region0: #{tpu_custom_call.1}
  #allocation0 [shape = 'u32[]', space=smem, size = 0x4, offset = 0x4, fixed_abs, tag = 'smem constant byte address 0x4 - core index']
  #allocation1 [shape = 'u32[144,128]{1,0:T(1,128)}', space=vmem, size = 0x12000, scoped, tag = 'internal scratch']
  %s0 = inlined_call_operand.vmem [shape: f32[64,32], index: 0, kind: input, shape index: {}]
  %s1 = inlined_call_operand.vmem [shape: f32[2,32,96], index: 1, kind: input, shape index: {}]
  %s2 = inlined_call_operand.vmem [shape: f32[2,1,96], index: 2, kind: input, shape index: {}]
  %s3 = inlined_call_operand.hbm [shape: f32[2,64,96], index: 3, kind: output, shape index: {}]
  %s4 = sld [smem:[#allocation0]]
  $region45: #{tpu_custom_call.1} parent=0
    _
  %s6 = ssub.s32 1, %s4
  %s7 = scalar_select 0, %s6, %s4
  $region1: #{tpu_custom_call.1} parent=0
    #allocation2 [shape = 'u8[65536]{0}', space=vmem, size = 0x10000, scoped, tag = 'output window, operand 0']
    #allocation3 [shape = 's32[2]{0}', space=sflag, size = 0x8, scoped, tag = 'scoped memory for tpu_custom_call.1']
    %8 = vsyncpa [#allocation3], 0
    %s9 = scalar_lea.sflag [#allocation3], 1
    %10 = vsyncpa %s9, 0
    loop: start=0, step=1, limit=4
    $region2: #{tpu_custom_call.1} parent=1 // loop_pre_header
      _
    $region3: #{tpu_custom_call.1} parent=1 // loop_header
      %s12 = sphi 0, %s16
      %p13 = scmp.ge.s32.totalorder %s12, 4
      %s20 = sphi 0, %s20
      %s22 = sphi 0, %s20
      %s23 = sphi 0, %s22
      %s37 = sphi 0, %s23
      %s43 = sphi 0, %s45
      %s46 = sphi 0, %s43
      %s47 = sphi 0, %s46
      %s63 = sphi 0, %s47
      %s69 = sphi 0, %s71
      %s72 = sphi 0, %s69
      %s73 = sphi 0, %s72
      %s89 = sphi 0, %s73
      %s95 = sphi 0, %s97
      %s98 = sphi 0, %s95
      %s99 = sphi 0, %s98
      %s115 = sphi 0, %s99
    $region4: #{tpu_custom_call.1} parent=1 // loop_header_branch
      %15 = sbr.rel (%p13) target = $region8
    $region5: #{tpu_custom_call.1} parent=1 // loop_body
      %s17 = ssub.s32 %s12, 1
      %s18 = ssub.s32 %s12, 2
      %s19 = sadd.s32 %s12, 1
      %s21 = sadd.s32 %s20, 1
      %p24 = scmp.eq.s32.totalorder %s12, 1
      %p25 = scmp.ne.s32.totalorder %s20, %s22
      %p26 = scmp.eq.s32.totalorder %s12, 0
      %p27 = por %p25, %p26
      %p28 = scmp.ne.s32.totalorder %s20, %s22
      %p29 = scmp.eq.s32.totalorder %s17, 1
      %p30 = por %p28, %p29
      %p31 = scmp.ne.s32.totalorder %s22, %s23
      %p32 = scmp.eq.s32.totalorder %s17, 0
      %p33 = por %p31, %p32
      %p34 = scmp.ne.s32.totalorder %s22, %s23
      %p35 = scmp.eq.s32.totalorder %s18, 1
      %p36 = por %p34, %p35
      %p38 = scmp.ne.s32.totalorder %s23, %s37
      %p39 = scmp.eq.s32.totalorder %s18, 0
      %p40 = por %p38, %p39
      %s41 = ssub.s32 %s12, %s19
      %p42 = scmp.eq.s32.totalorder %s41, 0
      %s44 = sadd.s32 %s43, 1
      %s45 = scalar_select %p42, %s43, %s44
      %p48 = pneg %p42
      %p49 = scmp.eq.s32.totalorder %s12, 1
      %p50 = por %p48, %p49
      %p51 = scmp.ne.s32.totalorder %s43, %s46
      %p52 = scmp.eq.s32.totalorder %s12, 0
      %p53 = por %p51, %p52
      %p54 = scmp.ne.s32.totalorder %s43, %s46
      %p55 = scmp.eq.s32.totalorder %s17, 1
      %p56 = por %p54, %p55
      %p57 = scmp.ne.s32.totalorder %s46, %s47
      %p58 = scmp.eq.s32.totalorder %s17, 0
      %p59 = por %p57, %p58
      %p60 = scmp.ne.s32.totalorder %s46, %s47
      %p61 = scmp.eq.s32.totalorder %s18, 1
      %p62 = por %p60, %p61
      %p64 = scmp.ne.s32.totalorder %s47, %s63
      %p65 = scmp.eq.s32.totalorder %s18, 0
      %p66 = por %p64, %p65
      %s67 = ssub.s32 %s12, %s19
      %p68 = scmp.eq.s32.totalorder %s67, 0
      %s70 = sadd.s32 %s69, 1
      %s71 = scalar_select %p68, %s69, %s70
      %p74 = pneg %p68
      %p75 = scmp.eq.s32.totalorder %s12, 1
      %p76 = por %p74, %p75
      %p77 = scmp.ne.s32.totalorder %s69, %s72
      %p78 = scmp.eq.s32.totalorder %s12, 0
      %p79 = por %p77, %p78
      %p80 = scmp.ne.s32.totalorder %s69, %s72
      %p81 = scmp.eq.s32.totalorder %s17, 1
      %p82 = por %p80, %p81
      %p83 = scmp.ne.s32.totalorder %s72, %s73
      %p84 = scmp.eq.s32.totalorder %s17, 0
      %p85 = por %p83, %p84
      %p86 = scmp.ne.s32.totalorder %s72, %s73
      %p87 = scmp.eq.s32.totalorder %s18, 1
      %p88 = por %p86, %p87
      %p90 = scmp.ne.s32.totalorder %s73, %s89
      %p91 = scmp.eq.s32.totalorder %s18, 0
      %p92 = por %p90, %p91
      %s93 = ssub.s32 %s12, %s19
      %p94 = scmp.eq.s32.totalorder %s93, 0
      %s96 = sadd.s32 %s95, 1
      %s97 = scalar_select %p94, %s95, %s96
      %p100 = pneg %p94
      %p101 = scmp.eq.s32.totalorder %s12, 1
      %p102 = por %p100, %p101
      %p103 = scmp.ne.s32.totalorder %s95, %s98
      %p104 = scmp.eq.s32.totalorder %s12, 0
      %p105 = por %p103, %p104
      %p106 = scmp.ne.s32.totalorder %s95, %s98
      %p107 = scmp.eq.s32.totalorder %s17, 1
      %p108 = por %p106, %p107
      %p109 = scmp.ne.s32.totalorder %s98, %s99
      %p110 = scmp.eq.s32.totalorder %s17, 0
      %p111 = por %p109, %p110
      %p112 = scmp.ne.s32.totalorder %s98, %s99
      %p113 = scmp.eq.s32.totalorder %s18, 1
      %p114 = por %p112, %p113
      %p116 = scmp.ne.s32.totalorder %s99, %s115
      %p117 = scmp.eq.s32.totalorder %s18, 0
      %p118 = por %p116, %p117
      %p119 = scmp.le.s32.totalorder 1, %s12
      %p120 = scmp.lt.s32.totalorder %s12, 3
      %p121 = pnand %p119, %p120
      %p122 = pneg %p121
      // Predicated region
      $region9: #{tpu_custom_call.1} parent=5 // pred_check
        _
      $region10: #{tpu_custom_call.1} parent=5 // pred_check_branch
        %124 = sbr.rel (%p121) target = $region12
      $region11: #{tpu_custom_call.1} parent=5 // pred_region
        %s125 = ssub.s32 %s12, 1
        // Predicated region
        $region13: #{tpu_custom_call.1} parent=11 // pred_check
          %p126 = pneg %p33
        $region14: #{tpu_custom_call.1} parent=11 // pred_check_branch
          %128 = sbr.rel (%p126) target = $region16
        $region15: #{tpu_custom_call.1} parent=11 // pred_region
          _
        $region16: #{tpu_custom_call.1} parent=11 // pred_fallthru
          _
      $region12: #{tpu_custom_call.1} parent=5 // pred_fallthru
        _
      %p129 = scmp.lt.s32.totalorder %s12, 2
      // Predicated region
      $region17: #{tpu_custom_call.1} parent=5 // pred_check
        %p130 = pneg %p129
      $region18: #{tpu_custom_call.1} parent=5 // pred_check_branch
        %132 = sbr.rel (%p130) target = $region20
      $region19: #{tpu_custom_call.1} parent=5 // pred_region
        // Predicated region
        $region21: #{tpu_custom_call.1} parent=19 // pred_check
          %p133 = pneg %p53
        $region22: #{tpu_custom_call.1} parent=19 // pred_check_branch
          %135 = sbr.rel (%p133) target = $region24
        $region23: #{tpu_custom_call.1} parent=19 // pred_region
          %p136 = scmp.lt.s32.totalorder %s12, 1
          %s137 = scalar_select %p136, %s12, 1
          %s138 = smul.addr %s137, 4
          %s139 = smul.addr %s138, 8
          %s140 = scalar_lea.vmem %s1, %s139
        $region24: #{tpu_custom_call.1} parent=19 // pred_fallthru
          _
        // Predicated region
        $region25: #{tpu_custom_call.1} parent=19 // pred_check
          %p141 = pneg %p79
        $region26: #{tpu_custom_call.1} parent=19 // pred_check_branch
          %143 = sbr.rel (%p141) target = $region28
        $region27: #{tpu_custom_call.1} parent=19 // pred_region
          %p144 = scmp.lt.s32.totalorder %s12, 1
          %s145 = scalar_select %p144, %s12, 1
          %s146 = scalar_lea.vmem %s2, %s145
        $region28: #{tpu_custom_call.1} parent=19 // pred_fallthru
          _
      $region20: #{tpu_custom_call.1} parent=5 // pred_fallthru
        _
      %p147 = scmp.le.s32.totalorder 1, %s12
      %p148 = scmp.lt.s32.totalorder %s12, 3
      %p149 = pnand %p147, %p148
      %p150 = pneg %p149
      // Predicated region
      $region29: #{tpu_custom_call.1} parent=5 // pred_check
        _
      $region30: #{tpu_custom_call.1} parent=5 // pred_check_branch
        %152 = sbr.rel (%p149) target = $region32
      $region31: #{tpu_custom_call.1} parent=5 // pred_region
        %s153 = ssub.s32 %s12, 1
        %p154 = pneg %p33
        %p155 = pneg %p30
        %p156 = scmp.lt.s32.totalorder %s17, 1
        %s157 = scalar_select %p156, %s17, 1
        %s158 = smul.addr %s157, 4
        %s159 = smul.addr %s158, 8
        %s160 = scalar_lea.vmem %s1, %s159
        %p161 = pneg %p59
        %p162 = pneg %p56
        %p163 = scmp.lt.s32.totalorder %s17, 1
        %s164 = scalar_select %p163, %s17, 1
        %s165 = scalar_lea.vmem %s2, %s164
        %p166 = pneg %p85
        %p167 = pneg %p82
        %p168 = pneg %p111
        %p169 = pneg %p108
        %s170 = sand.u32 %s98, 1
        %s171 = scalar_lea.sflag [#allocation3], %s170
        %s172 = sand.u32 %s98, 1
        %s173 = smul.addr %s172, 64
        %s174 = scalar_lea.vmem [#allocation2], %s173
        %p175 = scmp.lt.s32.totalorder %s17, 1
        %s176 = scalar_select %p175, %s17, 1
        %s177 = smul.addr %s176, 4
        %s178 = smul.addr %s177, 8
        %s179 = scalar_lea.vmem %s1, %s178
        %p180 = scmp.lt.s32.totalorder %s17, 1
        %s181 = scalar_select %p180, %s17, 1
        %s182 = scalar_lea.vmem %s2, %s181
        %v183 = vld [vmem:[%s0] sm:$0xff]
        %v184 = vld [vmem:[%s0 + $0x8] sm:$0xff]
        %v185 = vld [vmem:[%s0 + $0x10] sm:$0xff]
        %v186 = vld [vmem:[%s0 + $0x18] sm:$0xff]
        %v187 = vld [vmem:[%s0 + $0x20] sm:$0xff]
        %v188 = vld [vmem:[%s0 + $0x28] sm:$0xff]
        %v189 = vld [vmem:[%s0 + $0x30] sm:$0xff]
        %v190 = vld [vmem:[%s0 + $0x38] sm:$0xff]
        %v191 = vld [vmem:[%s179] sm:$0xff]
        %v192 = vld [vmem:[%s179 + $0x8] sm:$0xff]
        %v193 = vld [vmem:[%s179 + $0x10] sm:$0xff]
        %v194 = vld [vmem:[%s179 + $0x18] sm:$0xff]
        %v195 = vld [vmem:[%s182] sm:$0x1]
        %v197 = vlaneseq
        %v198 = vshrl.u32 %v197, 7
        %v199 = vsub.s32 0, %v198
        %v200 = vrot.slane %v195, %v199
        %vm202 = vcmask 261120
        %v204 = vsel %vm202, %v183, 0
        %v207 = vsel %vm202, %v184, 0
        %v210 = vsel %vm202, %v185, 0
        %v213 = vsel %vm202, %v186, 0
        %v216 = vsel %vm202, %v187, 0
        %v219 = vsel %vm202, %v188, 0
        %v222 = vsel %vm202, %v189, 0
        %v225 = vsel %vm202, %v190, 0
        %227 = vmatprep.subr.mxu0 0.0
        %228 = vmatpush1.msra.mxu0 %v191
        %229 = vmatprep.subr.mxu0 0.0
        %230 = vmatpush1.msra.mxu0 %v192
        %231 = vmatprep.subr.mxu0 0.0
        %232 = vmatpush1.msra.mxu0 %v193
        %233 = vmatprep.subr.mxu0 0.0
        %234 = vmatpush1.msra.mxu0 %v194
        %235 = vmatprep.subr.mxu0 0.0
        %236 = vmatpush1.msra.mxu0 0.0
        %237 = vmatprep.subr.mxu0 0.0
        %238 = vmatpush1.msra.mxu0 0.0
        %239 = vmatprep.subr.mxu0 0.0
        %240 = vmatpush1.msra.mxu0 0.0
        %241 = vmatprep.subr.mxu0 0.0
        %242 = vmatpush1.msra.mxu0 0.0
        %243 = vmatprep.subr.mxu0 0.0
        %244 = vmatpush1.msra.mxu0 0.0
        %245 = vmatprep.subr.mxu0 0.0
        %246 = vmatpush1.msra.mxu0 0.0
        %247 = vmatprep.subr.mxu0 0.0
        %248 = vmatpush1.msra.mxu0 0.0
        %249 = vmatprep.subr.mxu0 0.0
        %250 = vmatpush1.msra.mxu0 0.0
        %251 = vmatprep.subr.mxu0 0.0
        %252 = vmatpush1.msra.mxu0 0.0
        %253 = vmatprep.subr.mxu0 0.0
        %254 = vmatpush1.msra.mxu0 0.0
        %255 = vmatprep.subr.mxu0 0.0
        %256 = vmatpush1.msra.mxu0 0.0
        %257 = vmatprep.subr.mxu0 0.0
        %258 = vmatpush1.msra.mxu0 0.0
        %259 = vmatprep.subr.mxu0 0.0
        %260 = vmatpush1.msra.mxu0 0.0
        %261 = vmatprep.subr.mxu0 0.0
        %262 = vmatpush1.msra.mxu0 0.0
        %263 = vmatprep.subr.mxu0 0.0
        %264 = vmatpush1.msra.mxu0 0.0
        %265 = vmatprep.subr.mxu0 0.0
        %266 = vmatpush1.msra.mxu0 0.0
        %267 = vmatprep.subr.mxu0 0.0
        %268 = vmatpush1.msra.mxu0 0.0
        %269 = vmatprep.subr.mxu0 0.0
        %270 = vmatpush1.msra.mxu0 0.0
        %271 = vmatprep.subr.mxu0 0.0
        %272 = vmatpush1.msra.mxu0 0.0
        %273 = vmatprep.subr.mxu0 0.0
        %274 = vmatpush1.msra.mxu0 0.0
        %275 = vmatprep.subr.mxu0 0.0
        %276 = vmatpush1.msra.mxu0 0.0
        %277 = vmatprep.subr.mxu0 0.0
        %278 = vmatpush1.msra.mxu0 0.0
        %279 = vmatprep.subr.mxu0 0.0
        %280 = vmatpush1.msra.mxu0 0.0
        %281 = vmatprep.subr.mxu0 0.0
        %282 = vmatpush1.msra.mxu0 0.0
        %283 = vmatprep.subr.mxu0 0.0
        %284 = vmatpush1.msra.mxu0 0.0
        %285 = vmatprep.subr.mxu0 0.0
        %286 = vmatpush1.msra.mxu0 0.0
        %287 = vmatprep.subr.mxu0 0.0
        %288 = vmatpush1.msra.mxu0 0.0
        %289 = vmatprep.subr.mxu0 0.0
        %290 = vmatpush1.msra.mxu0 0.0
        %291 = vmatprep.mubr.f32.mxu0 0.0
        %292 = vmatmul.mubr.f32.gmra.mrb[0].mxu0 %v204
        %v293 = vpop.f32.mrb[0].mxu0
        %v294 = vadd.f32 %v200, %v293
        %v295 = vpop.f32.mrb[0].mxu0
        %296 = vmatprep.mubr.f32.mxu0 0.0
        %297 = vmatmul.mubr.f32.gmra.mrb[0].mxu0 %v207
        %v298 = vpop.f32.mrb[0].mxu0
        %v299 = vadd.f32 %v200, %v298
        %v300 = vpop.f32.mrb[0].mxu0
        %301 = vmatprep.mubr.f32.mxu0 0.0
        %302 = vmatmul.mubr.f32.gmra.mrb[0].mxu0 %v210
        %v303 = vpop.f32.mrb[0].mxu0
        %v304 = vadd.f32 %v200, %v303
        %v305 = vpop.f32.mrb[0].mxu0
        %306 = vmatprep.mubr.f32.mxu0 0.0
        %307 = vmatmul.mubr.f32.gmra.mrb[0].mxu0 %v213
        %v308 = vpop.f32.mrb[0].mxu0
        %v309 = vadd.f32 %v200, %v308
        %v310 = vpop.f32.mrb[0].mxu0
        %311 = vmatprep.mubr.f32.mxu0 0.0
        %312 = vmatmul.mubr.f32.gmra.mrb[0].mxu0 %v216
        %v313 = vpop.f32.mrb[0].mxu0
        %v314 = vadd.f32 %v200, %v313
        %v315 = vpop.f32.mrb[0].mxu0
        %316 = vmatprep.mubr.f32.mxu0 0.0
        %317 = vmatmul.mubr.f32.gmra.mrb[0].mxu0 %v219
        %v318 = vpop.f32.mrb[0].mxu0
        %v319 = vadd.f32 %v200, %v318
        %v320 = vpop.f32.mrb[0].mxu0
        %321 = vmatprep.mubr.f32.mxu0 0.0
        %322 = vmatmul.mubr.f32.gmra.mrb[0].mxu0 %v222
        %v323 = vpop.f32.mrb[0].mxu0
        %v324 = vadd.f32 %v200, %v323
        %v325 = vpop.f32.mrb[0].mxu0
        %326 = vmatprep.mubr.f32.mxu0 0.0
        %327 = vmatmul.mubr.f32.gmra.mrb[0].mxu0 %v225
        %v328 = vpop.f32.mrb[0].mxu0
        %v329 = vadd.f32 %v200, %v328
        %v330 = vpop.f32.mrb[0].mxu0
        %331 = vdwg.mxu0
        %vm332 = vcmask 785408
        %333 = vst.msk [vmem:[%s174] sm:$0xff] %vm332, %v294
        %334 = vst.msk [vmem:[%s174 + $0x8] sm:$0xff] %vm332, %v299
        %335 = vst.msk [vmem:[%s174 + $0x10] sm:$0xff] %vm332, %v304
        %336 = vst.msk [vmem:[%s174 + $0x18] sm:$0xff] %vm332, %v309
        %337 = vst.msk [vmem:[%s174 + $0x20] sm:$0xff] %vm332, %v314
        %338 = vst.msk [vmem:[%s174 + $0x28] sm:$0xff] %vm332, %v319
        %339 = vst.msk [vmem:[%s174 + $0x30] sm:$0xff] %vm332, %v324
        %340 = vst.msk [vmem:[%s174 + $0x38] sm:$0xff] %vm332, %v329
        %s341 = sand.u32 %s98, 1
        %s342 = scalar_lea.sflag [#allocation3], %s341
        %s343 = sand.u32 %s98, 1
        %s344 = smul.addr %s343, 64
        %s345 = scalar_lea.vmem [#allocation2], %s344
        // Predicated region
        $region33: #{tpu_custom_call.1} parent=31 // pred_check
          %p346 = pneg %p108
        $region34: #{tpu_custom_call.1} parent=31 // pred_check_branch
          %348 = sbr.rel (%p346) target = $region36
        $region35: #{tpu_custom_call.1} parent=31 // pred_region
          %s350 = ssub.s32 1024, 1024
          %351 = vsyncadd %s342, %s350
          %s352 = smul.addr %s17, 8
          %s353 = smul.addr %s352, 128
          %s354 = scalar_lea.hbm %s3, %s353
          %s355 = sshll.u32 %s345, 4
          %s356 = int_to_ptr.vmem [resolvable:$true] %s355
          %361 = dma.vmem_to_hbm [thread:$0]  %s356, 1024, %s354, %s342, 128, 128, 8
        $region36: #{tpu_custom_call.1} parent=31 // pred_fallthru
          _
      $region32: #{tpu_custom_call.1} parent=5 // pred_fallthru
        _
      %p362 = scmp.le.s32.totalorder 2, %s12
      // Predicated region
      $region37: #{tpu_custom_call.1} parent=5 // pred_check
        %p363 = pneg %p362
      $region38: #{tpu_custom_call.1} parent=5 // pred_check_branch
        %365 = sbr.rel (%p363) target = $region40
      $region39: #{tpu_custom_call.1} parent=5 // pred_region
        %s366 = ssub.s32 %s12, 2
        // Predicated region
        $region41: #{tpu_custom_call.1} parent=39 // pred_check
          %p367 = pneg %p114
        $region42: #{tpu_custom_call.1} parent=39 // pred_check_branch
          %369 = sbr.rel (%p367) target = $region44
        $region43: #{tpu_custom_call.1} parent=39 // pred_region
          %s370 = sand.u32 %s99, 1
          %s371 = scalar_lea.sflag [#allocation3], %s370
          %s372 = sand.u32 %s99, 1
          %s373 = smul.addr %s372, 64
          %s374 = scalar_lea.vmem [#allocation2], %s373
          %375 = dma.done %s371, 1024
        $region44: #{tpu_custom_call.1} parent=39 // pred_fallthru
          _
      $region40: #{tpu_custom_call.1} parent=5 // pred_fallthru
        _
    $region6: #{tpu_custom_call.1} parent=1 // loop_footer
      %s16 = sadd.s32 1, %s12
    $region7: #{tpu_custom_call.1} parent=1 // loop_footer_branch
      %11 = sbr.rel target = $region3
    $region8: #{tpu_custom_call.1} parent=1 // loop_exit
      _
    %376 = vsyncpa [#allocation3], 1
    %s377 = scalar_lea.sflag [#allocation3], 1
    %378 = vsyncpa %s377, 1

</llo_original>
